<compile_context>
chip_gen: v6e
topology: v6e:2x2x1
jax: 0.10.0
libtpu: 0.0.40
codegen_flags: <defaults>
</compile_context>

<pallas_src>
import functools

import jax
import jax.numpy as jnp
from jax.experimental import pallas as pl
from jax.experimental.pallas import tpu as pltpu

_BN_EPS = 1e-5


# ---------------------------------------------------------------------------
# Fused Pallas kernel.
# ---------------------------------------------------------------------------
def _temporal_block_kernel(
    xp_ref,                       # (N, L+2p, Cin)   pre-padded input, compute dtype
    w1_ref, g1_ref, be1_ref,      # (K*Cin, Cout), (1, Cout), (1, Cout)
    w2_ref, g2_ref, be2_ref,      # (K*Cout, Cout), (1, Cout), (1, Cout)
    ws_ref, gs_ref, bes_ref,      # (Cin, Cout), (1, Cout), (1, Cout)   (or dummies)
    out_ref,                      # (N*L, Cout) float32
    hpad_ref,                     # VMEM scratch (N, L+2p, Cout), compute dtype
    *, n, l, padding, dilation, k_taps, skip_is_conv,
):
    cin = xp_ref.shape[-1]
    cout = out_ref.shape[-1]
    cdt = xp_ref.dtype                      # matmul operand dtype (f32 or bf16)
    inv_count = 1.0 / float(n * l)

    xp = xp_ref[...]                        # (N, Lp, Cin)

    def tap_slab(a3d, c):
        # Fold the K taps into the contraction axis: (N, L, K*C) -> (N*L, K*C).
        taps = [a3d[:, k * dilation : k * dilation + l, :] for k in range(k_taps)]
        return jnp.concatenate(taps, axis=-1).reshape(n * l, k_taps * c)

    def bn_scale_shift(y, gamma, beta):
        # One-pass training-mode BN stats (biased variance), folded to scale/shift.
        s1 = jnp.sum(y, axis=0, keepdims=True) * inv_count          # E[y]
        s2 = jnp.sum(y * y, axis=0, keepdims=True) * inv_count      # E[y^2]
        var = s2 - s1 * s1
        scale = gamma * jax.lax.rsqrt(var + _BN_EPS)
        shift = beta - s1 * scale
        return scale, shift

    # ---- conv1 (single tap-folded MXU matmul) + BN1 + relu -------------------
    h = jnp.dot(tap_slab(xp, cin), w1_ref[...],
                preferred_element_type=jnp.float32)                 # (N*L, Cout) f32
    sc1, sh1 = bn_scale_shift(h, g1_ref[...], be1_ref[...])
    h = jnp.maximum(h * sc1 + sh1, 0.0)

    # ---- stage padded hidden activation in VMEM scratch (zero halo) ----------
    hpad_ref[...] = jnp.zeros_like(hpad_ref)
    hpad_ref[:, padding:padding + l, :] = h.reshape(n, l, cout).astype(cdt)

    # ---- conv2 + BN2 ----------------------------------------------------------
    h2 = jnp.dot(tap_slab(hpad_ref[...], cout), w2_ref[...],
                 preferred_element_type=jnp.float32)                # (N*L, Cout) f32
    sc2, sh2 = bn_scale_shift(h2, g2_ref[...], be2_ref[...])
    h2 = h2 * sc2 + sh2

    # ---- skip path ------------------------------------------------------------
    x_c = xp[:, padding:padding + l, :].reshape(n * l, cin)
    if skip_is_conv:
        r = jnp.dot(x_c, ws_ref[...], preferred_element_type=jnp.float32)
        scs, shs = bn_scale_shift(r, gs_ref[...], bes_ref[...])
        res = r * scs + shs
    else:
        res = x_c.astype(jnp.float32)

    # ---- residual add + relu ---------------------------------------------------
    out_ref[...] = jnp.maximum(h2 + res, 0.0)


# ---------------------------------------------------------------------------
# One-time parameter preparation (MXU-friendly layout, conv biases dropped).
# ---------------------------------------------------------------------------
def prepare_params(params, *, compute_dtype=jnp.bfloat16):
    """Convert PyTorch-layout params to the kernel layout.

    - conv weights (Cout, Cin, K) -> tap-folded (K*Cin, Cout), cast to compute_dtype
    - conv biases DROPPED: every conv output feeds training-mode BatchNorm, which
      subtracts the per-channel mean, so per-channel constants are inert.
    - gamma/beta -> (1, C) float32 rows.
    """
    cout, cin, _ = params["w1"].shape
    fold = lambda w: jnp.transpose(w, (2, 1, 0)).reshape(-1, w.shape[0]).astype(compute_dtype)
    row = lambda v: v.reshape(1, -1).astype(jnp.float32)

    kp = dict(
        w1=fold(params["w1"]), g1=row(params["g1"]), beta1=row(params["beta1"]),
        w2=fold(params["w2"]), g2=row(params["g2"]), beta2=row(params["beta2"]),
    )
    if cin != cout:
        kp.update(ws=fold(params["ws"]), gs=row(params["gs"]), betas=row(params["betas"]))
    else:
        z = jnp.zeros((1, 1), jnp.float32)
        kp.update(ws=z.astype(compute_dtype), gs=z, betas=z)   # never read (identity skip)
    return kp


# ---------------------------------------------------------------------------
# Wrapper: PyTorch-convention (N, C, L) in / out.
# ---------------------------------------------------------------------------
def improved_temporal_block(x, kparams, *, kernel_size, dilation,
                            compute_dtype=jnp.bfloat16):
    n, cin, l = x.shape
    cout = kparams["w1"].shape[-1]

    if (kernel_size - 1) * dilation % 2 != 0:
        # Same assumption as the PyTorch module: the residual add requires L_out == L.
        raise ValueError("(kernel_size - 1) * dilation must be even for 'same'-length output")
    padding = (kernel_size - 1) * dilation // 2
    lp = l + 2 * padding
    skip_is_conv = cin != cout

    # Channel-last + padding done once at the XLA/HBM boundary (free for the kernel).
    x_nlc = jnp.transpose(x, (0, 2, 1)).astype(compute_dtype)     # (N, L, Cin)
    xp = jnp.pad(x_nlc, ((0, 0), (padding, padding), (0, 0)))     # (N, L+2p, Cin)

    args = [
        xp,
        kparams["w1"], kparams["g1"], kparams["beta1"],
        kparams["w2"], kparams["g2"], kparams["beta2"],
        kparams["ws"], kparams["gs"], kparams["betas"],
    ]

    # Explicit scoped-VMEM budget sized from the live set (padded x, padded hidden
    # scratch, tap slabs, f32 conv/BN/residual intermediates, weights) with headroom.
    ib = jnp.dtype(compute_dtype).itemsize
    est = (
        ib * n * lp * (cin + cout)                       # padded input + hidden scratch
        + ib * n * l * kernel_size * (cin + cout)        # tap-folded activation slabs
        + 4 * n * l * cout * 6                           # f32 intermediates
        + 4 * kernel_size * (cin + cout) * cout * 2      # weights (generous)
    )
    vmem_limit = int(min(max(4 * est, 4 << 20), 64 << 20))

    # BN batch statistics couple the whole (N, L) extent, so the whole problem is one
    # VMEM-resident invocation (grid=()).  See TODO(synk) above for the gridded
    # two-pass variant needed at larger sizes.
    out2d = pl.pallas_call(
        functools.partial(
            _temporal_block_kernel,
            n=n, l=l, padding=padding, dilation=dilation,
            k_taps=kernel_size, skip_is_conv=skip_is_conv,
        ),
        out_shape=jax.ShapeDtypeStruct((n * l, cout), jnp.float32),
        in_specs=[pl.BlockSpec(memory_space=pltpu.MemorySpace.VMEM)] * len(args),
        out_specs=pl.BlockSpec(memory_space=pltpu.MemorySpace.VMEM),
        scratch_shapes=[pltpu.VMEM((n, lp, cout), compute_dtype)],
        compiler_params=pltpu.CompilerParams(vmem_limit_bytes=vmem_limit),
    )(*args)

    return jnp.transpose(out2d.reshape(n, l, cout), (0, 2, 1))    # back to (N, Cout, L)


# ---------------------------------------------------------------------------
# Deterministic parameter init (mimics PyTorch Conv1d/BatchNorm1d defaults).
# ---------------------------------------------------------------------------
def init_params(key, cin, cout, kernel_size):
    def conv_init(k, co, ci, ksz):
        kw, kb = jax.random.split(k)
        bound = float(ci * ksz) ** -0.5
        w = jax.random.uniform(kw, (co, ci, ksz), jnp.float32, -bound, bound)
        b = jax.random.uniform(kb, (co,), jnp.float32, -bound, bound)
        return w, b

    k1, k2, k3 = jax.random.split(key, 3)
    w1, b1 = conv_init(k1, cout, cin, kernel_size)
    w2, b2 = conv_init(k2, cout, cout, kernel_size)
    ws, bs = conv_init(k3, cout, cin, 1)
    ones = jnp.ones((cout,), jnp.float32)
    zeros = jnp.zeros((cout,), jnp.float32)
    return dict(
        w1=w1, b1=b1, g1=ones, beta1=zeros,
        w2=w2, b2=b2, g2=ones, beta2=zeros,
        ws=ws, bs=bs, gs=ones, betas=zeros,
    )


# ---------------------------------------------------------------------------
# Pure-JAX reference (mirrors the PyTorch forward, biases included).
# ---------------------------------------------------------------------------
def _ref_forward(x, p, *, kernel_size, dilation):
    pad = (kernel_size - 1) * dilation // 2

    def conv(xx, w, b, dil, padding):
        y = jax.lax.conv_general_dilated(
            xx, w, window_strides=(1,), padding=[(padding, padding)],
            rhs_dilation=(dil,), dimension_numbers=("NCH", "OIH", "NCH"))
        return y + b[None, :, None]

    def bn(xx, g, be):
        mean = jnp.mean(xx, axis=(0, 2), keepdims=True)
        var = jnp.mean(jnp.square(xx - mean), axis=(0, 2), keepdims=True)
        return (xx - mean) * jax.lax.rsqrt(var + _BN_EPS) * g[None, :, None] + be[None, :, None]

    res = bn(conv(x, p["ws"], p["bs"], 1, 0), p["gs"], p["betas"])
    h = jax.nn.relu(bn(conv(x, p["w1"], p["b1"], dilation, pad), p["g1"], p["beta1"]))
    h = bn(conv(h, p["w2"], p["b2"], dilation, pad), p["g2"], p["beta2"])
    return jax.nn.relu(h + res)


if __name__ == "__main__":
    N, C_IN, C_OUT, L = 2, 4, 8, 16
    KERNEL_SIZE, DILATION = 3, 2

    key = jax.random.PRNGKey(0)
    kx, kp = jax.random.split(key)
    x = jax.random.normal(kx, (N, C_IN, L), jnp.float32)     # PyTorch NCL layout
    params = init_params(kp, C_IN, C_OUT, KERNEL_SIZE)
    y_ref = _ref_forward(x, params, kernel_size=KERNEL_SIZE, dilation=DILATION)

    # f32 MXU operands: tight check against the PyTorch-equivalent reference.
    kp_f32 = prepare_params(params, compute_dtype=jnp.float32)
    y32 = jax.block_until_ready(improved_temporal_block(
        x, kp_f32, kernel_size=KERNEL_SIZE, dilation=DILATION, compute_dtype=jnp.float32))
    assert y32.shape == (N, C_OUT, L), y32.shape
    assert jnp.allclose(y32, y_ref, atol=2e-3, rtol=2e-3), float(jnp.max(jnp.abs(y32 - y_ref)))

    # bf16 MXU operands (fast path on v6e/v7x), f32 accumulation / BN: looser tolerance.
    kp_bf16 = prepare_params(params, compute_dtype=jnp.bfloat16)
    ybf = jax.block_until_ready(improved_temporal_block(
        x, kp_bf16, kernel_size=KERNEL_SIZE, dilation=DILATION, compute_dtype=jnp.bfloat16))
    assert ybf.shape == (N, C_OUT, L), ybf.shape
    assert jnp.allclose(ybf, y_ref, atol=5e-2, rtol=5e-2), float(jnp.max(jnp.abs(ybf - y_ref)))

    print("KERNEL_OK")
</pallas_src>

<mosaic_0001>
module attributes {stable_mosaic.version = 11 : i64} {
  func.func @_temporal_block_kernel(%arg0: memref<2x20x4xf32, #tpu.memory_space<vmem>>, %arg1: memref<12x8xf32, #tpu.memory_space<vmem>>, %arg2: memref<1x8xf32, #tpu.memory_space<vmem>>, %arg3: memref<1x8xf32, #tpu.memory_space<vmem>>, %arg4: memref<24x8xf32, #tpu.memory_space<vmem>>, %arg5: memref<1x8xf32, #tpu.memory_space<vmem>>, %arg6: memref<1x8xf32, #tpu.memory_space<vmem>>, %arg7: memref<4x8xf32, #tpu.memory_space<vmem>>, %arg8: memref<1x8xf32, #tpu.memory_space<vmem>>, %arg9: memref<1x8xf32, #tpu.memory_space<vmem>>, %arg10: memref<32x8xf32, #tpu.memory_space<vmem>>, %arg11: memref<2x20x8xf32, #tpu.memory_space<vmem>>) attributes {dimension_semantics = [], scalar_prefetch = 0 : i64, scratch_operands = 1 : i64, tpu.core_type = #tpu.core_type<tc>} {
    %c0 = arith.constant 0 : index
    %c0_0 = arith.constant 0 : index
    %c0_1 = arith.constant 0 : index
    %0 = vector.load %arg0[%c0, %c0_0, %c0_1] : memref<2x20x4xf32, #tpu.memory_space<vmem>>, vector<2x20x4xf32>
    %1 = vector.extract_strided_slice %0 {offsets = [0, 0, 0], sizes = [2, 16, 4], strides = [1, 1, 1]} : vector<2x20x4xf32> to vector<2x16x4xf32>
    %2 = vector.extract_strided_slice %0 {offsets = [0, 2, 0], sizes = [2, 16, 4], strides = [1, 1, 1]} : vector<2x20x4xf32> to vector<2x16x4xf32>
    %3 = vector.extract_strided_slice %0 {offsets = [0, 4, 0], sizes = [2, 16, 4], strides = [1, 1, 1]} : vector<2x20x4xf32> to vector<2x16x4xf32>
    %4 = tpu.concatenate %1, %2, %3 in 2 : vector<2x16x4xf32>, vector<2x16x4xf32>, vector<2x16x4xf32> -> vector<2x16x12xf32>
    %5 = vector.shape_cast %4 : vector<2x16x12xf32> to vector<32x12xf32>
    %c0_2 = arith.constant 0 : index
    %c0_3 = arith.constant 0 : index
    %6 = vector.load %arg1[%c0_2, %c0_3] : memref<12x8xf32, #tpu.memory_space<vmem>>, vector<12x8xf32>
    %cst = arith.constant dense<0.000000e+00> : vector<32x8xf32>
    %7 = tpu.matmul %5, %6, %cst {dimension_numbers = #tpu.dot_dimension_numbers<[1], [0], [0], [1], [0, 0, 1, 1], [], []>} : vector<32x12xf32>, vector<12x8xf32>, vector<32x8xf32> -> vector<32x8xf32>
    %c0_4 = arith.constant 0 : index
    %c0_5 = arith.constant 0 : index
    %8 = vector.load %arg2[%c0_4, %c0_5] : memref<1x8xf32, #tpu.memory_space<vmem>>, vector<1x8xf32>
    %c0_6 = arith.constant 0 : index
    %c0_7 = arith.constant 0 : index
    %9 = vector.load %arg3[%c0_6, %c0_7] : memref<1x8xf32, #tpu.memory_space<vmem>>, vector<1x8xf32>
    %cst_8 = arith.constant dense<0.000000e+00> : vector<8xf32>
    %10 = vector.multi_reduction <add>, %7, %cst_8 [0] : vector<32x8xf32> to vector<8xf32>
    %11 = vector.shape_cast %10 : vector<8xf32> to vector<1x8xf32>
    %cst_9 = arith.constant 3.125000e-02 : f32
    %12 = vector.broadcast %cst_9 : f32 to vector<1x8xf32>
    %13 = arith.mulf %11, %12 : vector<1x8xf32>
    %14 = arith.mulf %7, %7 : vector<32x8xf32>
    %cst_10 = arith.constant dense<0.000000e+00> : vector<8xf32>
    %15 = vector.multi_reduction <add>, %14, %cst_10 [0] : vector<32x8xf32> to vector<8xf32>
    %16 = vector.shape_cast %15 : vector<8xf32> to vector<1x8xf32>
    %cst_11 = arith.constant 3.125000e-02 : f32
    %17 = vector.broadcast %cst_11 : f32 to vector<1x8xf32>
    %18 = arith.mulf %16, %17 : vector<1x8xf32>
    %19 = arith.mulf %13, %13 : vector<1x8xf32>
    %20 = arith.subf %18, %19 : vector<1x8xf32>
    %cst_12 = arith.constant 9.99999974E-6 : f32
    %21 = vector.broadcast %cst_12 : f32 to vector<1x8xf32>
    %22 = arith.addf %20, %21 : vector<1x8xf32>
    %23 = math.rsqrt %22 : vector<1x8xf32>
    %24 = arith.mulf %8, %23 : vector<1x8xf32>
    %25 = arith.mulf %13, %24 : vector<1x8xf32>
    %26 = arith.subf %9, %25 : vector<1x8xf32>
    %27 = vector.broadcast %24 : vector<1x8xf32> to vector<32x8xf32>
    %28 = arith.mulf %7, %27 : vector<32x8xf32>
    %29 = vector.broadcast %26 : vector<1x8xf32> to vector<32x8xf32>
    %30 = arith.addf %28, %29 : vector<32x8xf32>
    %cst_13 = arith.constant 0.000000e+00 : f32
    %31 = vector.broadcast %cst_13 : f32 to vector<32x8xf32>
    %32 = arith.maximumf %30, %31 : vector<32x8xf32>
    %cst_14 = arith.constant 0.000000e+00 : f32
    %33 = vector.broadcast %cst_14 : f32 to vector<2x20x8xf32>
    %c0_15 = arith.constant 0 : index
    %c0_16 = arith.constant 0 : index
    %c0_17 = arith.constant 0 : index
    %34 = vector.load %arg11[%c0_15, %c0_16, %c0_17] : memref<2x20x8xf32, #tpu.memory_space<vmem>>, vector<2x20x8xf32>
    tpu.vector_store %arg11[%c0_15, %c0_16, %c0_17], %33 {strides = array<i32>} : memref<2x20x8xf32, #tpu.memory_space<vmem>>, vector<2x20x8xf32>,
    %35 = vector.shape_cast %32 : vector<32x8xf32> to vector<2x16x8xf32>
    %c0_18 = arith.constant 0 : index
    %c2 = arith.constant 2 : index
    %c0_19 = arith.constant 0 : index
    %36 = vector.load %arg11[%c0_18, %c2, %c0_19] : memref<2x20x8xf32, #tpu.memory_space<vmem>>, vector<2x16x8xf32>
    tpu.vector_store %arg11[%c0_18, %c2, %c0_19], %35 {strides = array<i32>} : memref<2x20x8xf32, #tpu.memory_space<vmem>>, vector<2x16x8xf32>,
    %c0_20 = arith.constant 0 : index
    %c0_21 = arith.constant 0 : index
    %c0_22 = arith.constant 0 : index
    %37 = vector.load %arg11[%c0_20, %c0_21, %c0_22] : memref<2x20x8xf32, #tpu.memory_space<vmem>>, vector<2x20x8xf32>
    %38 = vector.extract_strided_slice %37 {offsets = [0, 0, 0], sizes = [2, 16, 8], strides = [1, 1, 1]} : vector<2x20x8xf32> to vector<2x16x8xf32>
    %39 = vector.extract_strided_slice %37 {offsets = [0, 2, 0], sizes = [2, 16, 8], strides = [1, 1, 1]} : vector<2x20x8xf32> to vector<2x16x8xf32>
    %40 = vector.extract_strided_slice %37 {offsets = [0, 4, 0], sizes = [2, 16, 8], strides = [1, 1, 1]} : vector<2x20x8xf32> to vector<2x16x8xf32>
    %41 = tpu.concatenate %38, %39, %40 in 2 : vector<2x16x8xf32>, vector<2x16x8xf32>, vector<2x16x8xf32> -> vector<2x16x24xf32>
    %42 = vector.shape_cast %41 : vector<2x16x24xf32> to vector<32x24xf32>
    %c0_23 = arith.constant 0 : index
    %c0_24 = arith.constant 0 : index
    %43 = vector.load %arg4[%c0_23, %c0_24] : memref<24x8xf32, #tpu.memory_space<vmem>>, vector<24x8xf32>
    %cst_25 = arith.constant dense<0.000000e+00> : vector<32x8xf32>
    %44 = tpu.matmul %42, %43, %cst_25 {dimension_numbers = #tpu.dot_dimension_numbers<[1], [0], [0], [1], [0, 0, 1, 1], [], []>} : vector<32x24xf32>, vector<24x8xf32>, vector<32x8xf32> -> vector<32x8xf32>
    %c0_26 = arith.constant 0 : index
    %c0_27 = arith.constant 0 : index
    %45 = vector.load %arg5[%c0_26, %c0_27] : memref<1x8xf32, #tpu.memory_space<vmem>>, vector<1x8xf32>
    %c0_28 = arith.constant 0 : index
    %c0_29 = arith.constant 0 : index
    %46 = vector.load %arg6[%c0_28, %c0_29] : memref<1x8xf32, #tpu.memory_space<vmem>>, vector<1x8xf32>
    %cst_30 = arith.constant dense<0.000000e+00> : vector<8xf32>
    %47 = vector.multi_reduction <add>, %44, %cst_30 [0] : vector<32x8xf32> to vector<8xf32>
    %48 = vector.shape_cast %47 : vector<8xf32> to vector<1x8xf32>
    %cst_31 = arith.constant 3.125000e-02 : f32
    %49 = vector.broadcast %cst_31 : f32 to vector<1x8xf32>
    %50 = arith.mulf %48, %49 : vector<1x8xf32>
    %51 = arith.mulf %44, %44 : vector<32x8xf32>
    %cst_32 = arith.constant dense<0.000000e+00> : vector<8xf32>
    %52 = vector.multi_reduction <add>, %51, %cst_32 [0] : vector<32x8xf32> to vector<8xf32>
    %53 = vector.shape_cast %52 : vector<8xf32> to vector<1x8xf32>
    %cst_33 = arith.constant 3.125000e-02 : f32
    %54 = vector.broadcast %cst_33 : f32 to vector<1x8xf32>
    %55 = arith.mulf %53, %54 : vector<1x8xf32>
    %56 = arith.mulf %50, %50 : vector<1x8xf32>
    %57 = arith.subf %55, %56 : vector<1x8xf32>
    %cst_34 = arith.constant 9.99999974E-6 : f32
    %58 = vector.broadcast %cst_34 : f32 to vector<1x8xf32>
    %59 = arith.addf %57, %58 : vector<1x8xf32>
    %60 = math.rsqrt %59 : vector<1x8xf32>
    %61 = arith.mulf %45, %60 : vector<1x8xf32>
    %62 = arith.mulf %50, %61 : vector<1x8xf32>
    %63 = arith.subf %46, %62 : vector<1x8xf32>
    %64 = vector.broadcast %61 : vector<1x8xf32> to vector<32x8xf32>
    %65 = arith.mulf %44, %64 : vector<32x8xf32>
    %66 = vector.broadcast %63 : vector<1x8xf32> to vector<32x8xf32>
    %67 = arith.addf %65, %66 : vector<32x8xf32>
    %68 = vector.extract_strided_slice %0 {offsets = [0, 2, 0], sizes = [2, 16, 4], strides = [1, 1, 1]} : vector<2x20x4xf32> to vector<2x16x4xf32>
    %69 = vector.shape_cast %68 : vector<2x16x4xf32> to vector<32x4xf32>
    %c0_35 = arith.constant 0 : index
    %c0_36 = arith.constant 0 : index
    %70 = vector.load %arg7[%c0_35, %c0_36] : memref<4x8xf32, #tpu.memory_space<vmem>>, vector<4x8xf32>
    %cst_37 = arith.constant dense<0.000000e+00> : vector<32x8xf32>
    %71 = tpu.matmul %69, %70, %cst_37 {dimension_numbers = #tpu.dot_dimension_numbers<[1], [0], [0], [1], [0, 0, 1, 1], [], []>} : vector<32x4xf32>, vector<4x8xf32>, vector<32x8xf32> -> vector<32x8xf32>
    %c0_38 = arith.constant 0 : index
    %c0_39 = arith.constant 0 : index
    %72 = vector.load %arg8[%c0_38, %c0_39] : memref<1x8xf32, #tpu.memory_space<vmem>>, vector<1x8xf32>
    %c0_40 = arith.constant 0 : index
    %c0_41 = arith.constant 0 : index
    %73 = vector.load %arg9[%c0_40, %c0_41] : memref<1x8xf32, #tpu.memory_space<vmem>>, vector<1x8xf32>
    %cst_42 = arith.constant dense<0.000000e+00> : vector<8xf32>
    %74 = vector.multi_reduction <add>, %71, %cst_42 [0] : vector<32x8xf32> to vector<8xf32>
    %75 = vector.shape_cast %74 : vector<8xf32> to vector<1x8xf32>
    %cst_43 = arith.constant 3.125000e-02 : f32
    %76 = vector.broadcast %cst_43 : f32 to vector<1x8xf32>
    %77 = arith.mulf %75, %76 : vector<1x8xf32>
    %78 = arith.mulf %71, %71 : vector<32x8xf32>
    %cst_44 = arith.constant dense<0.000000e+00> : vector<8xf32>
    %79 = vector.multi_reduction <add>, %78, %cst_44 [0] : vector<32x8xf32> to vector<8xf32>
    %80 = vector.shape_cast %79 : vector<8xf32> to vector<1x8xf32>
    %cst_45 = arith.constant 3.125000e-02 : f32
    %81 = vector.broadcast %cst_45 : f32 to vector<1x8xf32>
    %82 = arith.mulf %80, %81 : vector<1x8xf32>
    %83 = arith.mulf %77, %77 : vector<1x8xf32>
    %84 = arith.subf %82, %83 : vector<1x8xf32>
    %cst_46 = arith.constant 9.99999974E-6 : f32
    %85 = vector.broadcast %cst_46 : f32 to vector<1x8xf32>
    %86 = arith.addf %84, %85 : vector<1x8xf32>
    %87 = math.rsqrt %86 : vector<1x8xf32>
    %88 = arith.mulf %72, %87 : vector<1x8xf32>
    %89 = arith.mulf %77, %88 : vector<1x8xf32>
    %90 = arith.subf %73, %89 : vector<1x8xf32>
    %91 = vector.broadcast %88 : vector<1x8xf32> to vector<32x8xf32>
    %92 = arith.mulf %71, %91 : vector<32x8xf32>
    %93 = vector.broadcast %90 : vector<1x8xf32> to vector<32x8xf32>
    %94 = arith.addf %92, %93 : vector<32x8xf32>
    %95 = arith.addf %67, %94 : vector<32x8xf32>
    %cst_47 = arith.constant 0.000000e+00 : f32
    %96 = vector.broadcast %cst_47 : f32 to vector<32x8xf32>
    %97 = arith.maximumf %95, %96 : vector<32x8xf32>
    %c0_48 = arith.constant 0 : index
    %c0_49 = arith.constant 0 : index
    %98 = vector.load %arg10[%c0_48, %c0_49] : memref<32x8xf32, #tpu.memory_space<vmem>>, vector<32x8xf32>
    tpu.vector_store %arg10[%c0_48, %c0_49], %97 {strides = array<i32>} : memref<32x8xf32, #tpu.memory_space<vmem>>, vector<32x8xf32>,
    return
  }
}

</mosaic_0001>

<llo_original>
// kernel: tpu_custom_call.1
$region0: #{tpu_custom_call.1}
  #allocation0 [shape = 'u32[]', space=smem, size = 0x4, offset = 0x4, fixed_abs, tag = 'smem constant byte address 0x4 - core index']
  #allocation1 [shape = 'u32[144,128]{1,0:T(1,128)}', space=vmem, size = 0x12000, scoped, tag = 'internal scratch']
  #allocation2 [shape = 'f32[2,20,8]{2,1,0:T(8,128)}', space=vmem, size = 0x6000, scoped, tag = 'scratch operand']
  %s0 = inlined_call_operand.vmem [shape: f32[2,20,4], index: 0, kind: input, shape index: {}]
  %s1 = inlined_call_operand.vmem [shape: f32[12,8], index: 1, kind: input, shape index: {}]
  %s2 = inlined_call_operand.vmem [shape: f32[1,8], index: 2, kind: input, shape index: {}]
  %s3 = inlined_call_operand.vmem [shape: f32[1,8], index: 3, kind: input, shape index: {}]
  %s4 = inlined_call_operand.vmem [shape: f32[24,8], index: 4, kind: input, shape index: {}]
  %s5 = inlined_call_operand.vmem [shape: f32[1,8], index: 5, kind: input, shape index: {}]
  %s6 = inlined_call_operand.vmem [shape: f32[1,8], index: 6, kind: input, shape index: {}]
  %s7 = inlined_call_operand.vmem [shape: f32[4,8], index: 7, kind: input, shape index: {}]
  %s8 = inlined_call_operand.vmem [shape: f32[1,8], index: 8, kind: input, shape index: {}]
  %s9 = inlined_call_operand.vmem [shape: f32[1,8], index: 9, kind: input, shape index: {}]
  %s10 = inlined_call_operand.vmem [shape: f32[32,8], index: 10, kind: output, shape index: {}]
  %s11 = sld [smem:[#allocation0]]
  $region50: #{tpu_custom_call.1} parent=0
    _
  %s13 = ssub.s32 1, %s11
  %s14 = scalar_select 0, %s13, %s11
  // Predicated region
  $region2: #{tpu_custom_call.1} parent=0 // pred_check
    _
  $region3: #{tpu_custom_call.1} parent=0 // pred_check_branch
    %16 = sbr.rel (0) target = $region5
  $region4: #{tpu_custom_call.1} parent=0 // pred_region
    _
  $region5: #{tpu_custom_call.1} parent=0 // pred_fallthru
    _
  // Predicated region
  $region6: #{tpu_custom_call.1} parent=0 // pred_check
    _
  $region7: #{tpu_custom_call.1} parent=0 // pred_check_branch
    %18 = sbr.rel (0) target = $region9
  $region8: #{tpu_custom_call.1} parent=0 // pred_region
    _
  $region9: #{tpu_custom_call.1} parent=0 // pred_fallthru
    _
  // Predicated region
  $region10: #{tpu_custom_call.1} parent=0 // pred_check
    _
  $region11: #{tpu_custom_call.1} parent=0 // pred_check_branch
    %20 = sbr.rel (0) target = $region13
  $region12: #{tpu_custom_call.1} parent=0 // pred_region
    _
  $region13: #{tpu_custom_call.1} parent=0 // pred_fallthru
    _
  // Predicated region
  $region14: #{tpu_custom_call.1} parent=0 // pred_check
    _
  $region15: #{tpu_custom_call.1} parent=0 // pred_check_branch
    %22 = sbr.rel (0) target = $region17
  $region16: #{tpu_custom_call.1} parent=0 // pred_region
    _
  $region17: #{tpu_custom_call.1} parent=0 // pred_fallthru
    _
  // Predicated region
  $region18: #{tpu_custom_call.1} parent=0 // pred_check
    _
  $region19: #{tpu_custom_call.1} parent=0 // pred_check_branch
    %24 = sbr.rel (0) target = $region21
  $region20: #{tpu_custom_call.1} parent=0 // pred_region
    _
  $region21: #{tpu_custom_call.1} parent=0 // pred_fallthru
    _
  // Predicated region
  $region22: #{tpu_custom_call.1} parent=0 // pred_check
    _
  $region23: #{tpu_custom_call.1} parent=0 // pred_check_branch
    %26 = sbr.rel (0) target = $region25
  $region24: #{tpu_custom_call.1} parent=0 // pred_region
    _
  $region25: #{tpu_custom_call.1} parent=0 // pred_fallthru
    _
  // Predicated region
  $region26: #{tpu_custom_call.1} parent=0 // pred_check
    _
  $region27: #{tpu_custom_call.1} parent=0 // pred_check_branch
    %28 = sbr.rel (0) target = $region29
  $region28: #{tpu_custom_call.1} parent=0 // pred_region
    _
  $region29: #{tpu_custom_call.1} parent=0 // pred_fallthru
    _
  // Predicated region
  $region30: #{tpu_custom_call.1} parent=0 // pred_check
    _
  $region31: #{tpu_custom_call.1} parent=0 // pred_check_branch
    %30 = sbr.rel (0) target = $region33
  $region32: #{tpu_custom_call.1} parent=0 // pred_region
    _
  $region33: #{tpu_custom_call.1} parent=0 // pred_fallthru
    _
  // Predicated region
  $region34: #{tpu_custom_call.1} parent=0 // pred_check
    _
  $region35: #{tpu_custom_call.1} parent=0 // pred_check_branch
    %32 = sbr.rel (0) target = $region37
  $region36: #{tpu_custom_call.1} parent=0 // pred_region
    _
  $region37: #{tpu_custom_call.1} parent=0 // pred_fallthru
    _
  // Predicated region
  $region38: #{tpu_custom_call.1} parent=0 // pred_check
    _
  $region39: #{tpu_custom_call.1} parent=0 // pred_check_branch
    %34 = sbr.rel (0) target = $region41
  $region40: #{tpu_custom_call.1} parent=0 // pred_region
    _
  $region41: #{tpu_custom_call.1} parent=0 // pred_fallthru
    _
  %v35 = vld [vmem:[%s0] sm:$0xff]
  %v36 = vld [vmem:[%s0 + $0x8] sm:$0xff]
  %v37 = vld [vmem:[%s0 + $0x10] sm:$0xf]
  %v38 = vld [vmem:[%s0 + $0x18] sm:$0xff]
  %v39 = vld [vmem:[%s0 + $0x20] sm:$0xff]
  %v40 = vld [vmem:[%s0 + $0x28] sm:$0xf]
  %vm47 = vcmask 1045504
  %v48 = vrot.slane %v35, 2
  %v49 = vrot.slane %v36, 2
  %v50 = vsel %vm47, %v48, %v49
  %v51 = vrot.slane %v37, 2
  %v52 = vsel %vm47, %v49, %v51
  %v53 = vrot.slane %v38, 2
  %v54 = vrot.slane %v39, 2
  %v55 = vsel %vm47, %v53, %v54
  %v56 = vrot.slane %v40, 2
  %v57 = vsel %vm47, %v54, %v56
  %58 = vrot.lane.b32.xlu0 %v50, 4
  %v59 = vpop.permute.xlu0 %58
  %60 = vrot.lane.b32.xlu0 %v52, 4
  %v61 = vpop.permute.xlu0 %60
  %62 = vrot.lane.b32.xlu0 %v55, 4
  %v63 = vpop.permute.xlu0 %62
  %64 = vrot.lane.b32.xlu0 %v57, 4
  %v65 = vpop.permute.xlu0 %64
  %vm70 = vcmask 1043456
  %v71 = vrot.slane %v35, 4
  %v72 = vrot.slane %v36, 4
  %v73 = vsel %vm70, %v71, %v72
  %v74 = vrot.slane %v37, 4
  %v75 = vsel %vm70, %v72, %v74
  %v76 = vrot.slane %v38, 4
  %v77 = vrot.slane %v39, 4
  %v78 = vsel %vm70, %v76, %v77
  %v79 = vrot.slane %v40, 4
  %v80 = vsel %vm70, %v77, %v79
  %81 = vrot.lane.b32.xlu0 %v73, 8
  %v82 = vpop.permute.xlu0 %81
  %83 = vrot.lane.b32.xlu0 %v75, 8
  %v84 = vpop.permute.xlu0 %83
  %85 = vrot.lane.b32.xlu0 %v78, 8
  %v86 = vpop.permute.xlu0 %85
  %87 = vrot.lane.b32.xlu0 %v80, 8
  %v88 = vpop.permute.xlu0 %87
  %vm93 = vcmask 31744
  %v94 = vsel %vm93, %v35, %v59
  %v95 = vsel %vm93, %v36, %v61
  %v96 = vsel %vm93, %v38, %v63
  %v97 = vsel %vm93, %v39, %v65
  %vm98 = vcmask 64512
  %v99 = vsel %vm98, %v94, %v82
  %v100 = vsel %vm98, %v95, %v84
  %v101 = vsel %vm98, %v96, %v86
  %v102 = vsel %vm98, %v97, %v88
  %v103 = vld [vmem:[%s1] sm:$0xff]
  %v104 = vld [vmem:[%s1 + $0x8] sm:$0xf]
  %vm105 = vcmask 97280
  %v107 = vsel %vm105, %v99, 0
  %v110 = vsel %vm105, %v100, 0
  %v113 = vsel %vm105, %v101, 0
  %v116 = vsel %vm105, %v102, 0
  %v119 = vsel %vm70, %v104, 0
  %121 = vmatprep.subr.mxu0 0.0
  %122 = vmatpush1.msra.mxu0 0.0
  %123 = vmatprep.subr.mxu0 0.0
  %124 = vmatpush1.msra.mxu0 0.0
  %125 = vmatprep.subr.mxu0 0.0
  %126 = vmatpush1.msra.mxu0 0.0
  %127 = vmatprep.subr.mxu0 0.0
  %128 = vmatpush1.msra.mxu0 0.0
  %129 = vmatprep.subr.mxu0 0.0
  %130 = vmatpush1.msra.mxu0 0.0
  %131 = vmatprep.subr.mxu0 0.0
  %132 = vmatpush1.msra.mxu0 0.0
  %133 = vmatprep.subr.mxu0 0.0
  %134 = vmatpush1.msra.mxu0 0.0
  %135 = vmatprep.subr.mxu0 0.0
  %136 = vmatpush1.msra.mxu0 0.0
  %137 = vmatprep.subr.mxu0 0.0
  %138 = vmatpush1.msra.mxu0 0.0
  %139 = vmatprep.subr.mxu0 0.0
  %140 = vmatpush1.msra.mxu0 0.0
  %141 = vmatprep.subr.mxu0 0.0
  %142 = vmatpush1.msra.mxu0 0.0
  %143 = vmatprep.subr.mxu0 0.0
  %144 = vmatpush1.msra.mxu0 0.0
  %145 = vmatprep.subr.mxu0 0.0
  %146 = vmatpush1.msra.mxu0 0.0
  %147 = vmatprep.subr.mxu0 0.0
  %148 = vmatpush1.msra.mxu0 0.0
  %149 = vmatprep.subr.mxu0 0.0
  %150 = vmatpush1.msra.mxu0 %v119
  %151 = vmatprep.subr.mxu0 0.0
  %152 = vmatpush1.msra.mxu0 %v103
  %153 = vmatprep.subr.mxu0 0.0
  %154 = vmatpush2.msra.mxu0 0.0
  %155 = vmatprep.subr.mxu0 0.0
  %156 = vmatpush2.msra.mxu0 0.0
  %157 = vmatprep.subr.mxu0 0.0
  %158 = vmatpush2.msra.mxu0 0.0
  %159 = vmatprep.subr.mxu0 0.0
  %160 = vmatpush2.msra.mxu0 0.0
  %161 = vmatprep.subr.mxu0 0.0
  %162 = vmatpush2.msra.mxu0 0.0
  %163 = vmatprep.subr.mxu0 0.0
  %164 = vmatpush2.msra.mxu0 0.0
  %165 = vmatprep.subr.mxu0 0.0
  %166 = vmatpush2.msra.mxu0 0.0
  %167 = vmatprep.subr.mxu0 0.0
  %168 = vmatpush2.msra.mxu0 0.0
  %169 = vmatprep.subr.mxu0 0.0
  %170 = vmatpush2.msra.mxu0 0.0
  %171 = vmatprep.subr.mxu0 0.0
  %172 = vmatpush2.msra.mxu0 0.0
  %173 = vmatprep.subr.mxu0 0.0
  %174 = vmatpush2.msra.mxu0 0.0
  %175 = vmatprep.subr.mxu0 0.0
  %176 = vmatpush2.msra.mxu0 0.0
  %177 = vmatprep.subr.mxu0 0.0
  %178 = vmatpush2.msra.mxu0 0.0
  %179 = vmatprep.subr.mxu0 0.0
  %180 = vmatpush2.msra.mxu0 0.0
  %181 = vmatprep.subr.mxu0 0.0
  %182 = vmatpush2.msra.mxu0 0.0
  %183 = vmatprep.subr.mxu0 0.0
  %184 = vmatpush2.msra.mxu0 0.0
  %185 = vmatprep.mubr.f32.mxu0 0.0
  %186 = vmatmul.mubr.f32.gmra.mxu0 %v107
  %v187 = vpop.f32.mrf.mxu0
  %v188 = vadd.f32 0.0, %v187
  %v189 = vpop.f32.mrf.mxu0
  %190 = vmatprep.mubr.f32.mxu0 0.0
  %191 = vmatmul.mubr.f32.gmra.mxu0 %v110
  %v192 = vpop.f32.mrf.mxu0
  %v193 = vadd.f32 0.0, %v192
  %v194 = vpop.f32.mrf.mxu0
  %195 = vmatprep.mubr.f32.mxu0 0.0
  %196 = vmatmul.mubr.f32.gmra.mxu0 %v113
  %v197 = vpop.f32.mrf.mxu0
  %v198 = vadd.f32 0.0, %v197
  %v199 = vpop.f32.mrf.mxu0
  %200 = vmatprep.mubr.f32.mxu0 0.0
  %201 = vmatmul.mubr.f32.gmra.mxu0 %v116
  %v202 = vpop.f32.mrf.mxu0
  %v203 = vadd.f32 0.0, %v202
  %v204 = vpop.f32.mrf.mxu0
  %205 = vdwg.mxu0
  %v206 = vld [vmem:[%s2] sm:$0x1]
  %v207 = vld [vmem:[%s3] sm:$0x1]
  %v208 = vsel %vm98, %v188, 0.0
  %v209 = vsel %vm98, %v193, 0.0
  %v210 = vadd.f32 %v208, %v209
  %v211 = vsel %vm98, %v198, 0.0
  %v212 = vadd.f32 %v210, %v211
  %v213 = vsel %vm98, %v203, 0.0
  %v214 = vadd.f32 %v212, %v213
  %v215 = vrot.slane %v214, 4
  %v216 = vadd.f32 %v214, %v215
  %v217 = vrot.slane %v216, 2
  %v218 = vadd.f32 %v216, %v217
  %v219 = vrot.slane %v218, 1
  %v220 = vadd.f32 %v218, %v219
  %v221 = vmul.f32 %v220, 0.03125
  %v222 = vmul.f32 %v188, %v188
  %v223 = vmul.f32 %v193, %v193
  %v224 = vmul.f32 %v198, %v198
  %v225 = vmul.f32 %v203, %v203
  %v226 = vsel %vm98, %v222, 0.0
  %v227 = vsel %vm98, %v223, 0.0
  %v228 = vadd.f32 %v226, %v227
  %v229 = vsel %vm98, %v224, 0.0
  %v230 = vadd.f32 %v228, %v229
  %v231 = vsel %vm98, %v225, 0.0
  %v232 = vadd.f32 %v230, %v231
  %v233 = vrot.slane %v232, 4
  %v234 = vadd.f32 %v232, %v233
  %v235 = vrot.slane %v234, 2
  %v236 = vadd.f32 %v234, %v235
  %v237 = vrot.slane %v236, 1
  %v238 = vadd.f32 %v236, %v237
  %v239 = vmul.f32 %v238, 0.03125
  %v240 = vmul.f32 %v221, %v221
  %v241 = vsub.f32 %v239, %v240
  %v242 = vadd.f32 %v241, 1e-05
  %v243 = vrsqrt.pop %v242
  %v244 = vmul.f32 %v206, %v243
  %v245 = vmul.f32 %v221, %v244
  %v246 = vsub.f32 %v207, %v245
  %v248 = vlaneseq
  %v249 = vshrl.u32 %v248, 7
  %v250 = vsub.s32 0, %v249
  %v251 = vrot.slane %v244, %v250
  %v253 = vmul.f32 %v188, %v251
  %v254 = vmul.f32 %v193, %v251
  %v255 = vmul.f32 %v198, %v251
  %v256 = vmul.f32 %v203, %v251
  %v258 = vlaneseq
  %v259 = vshrl.u32 %v258, 7
  %v260 = vsub.s32 0, %v259
  %v261 = vrot.slane %v246, %v260
  %v263 = vadd.f32 %v253, %v261
  %v264 = vadd.f32 %v254, %v261
  %v265 = vadd.f32 %v255, %v261
  %v266 = vadd.f32 %v256, %v261
  %v267 = vmax.f32 %v263, 0.0
  %v268 = vmax.f32 %v264, 0.0
  %v269 = vmax.f32 %v265, 0.0
  %v270 = vmax.f32 %v266, 0.0
  %271 = vst.msk [vmem:[#allocation2] sm:$0xff] %vm98, 0.0
  %272 = vst.msk [vmem:[#allocation2 + $0x8] sm:$0xff] %vm98, 0.0
  %vm273 = vcmask 60416
  %274 = vst.msk [vmem:[#allocation2 + $0x10] sm:$0xf] %vm273, 0.0
  %275 = vst.msk [vmem:[#allocation2 + $0x18] sm:$0xff] %vm98, 0.0
  %276 = vst.msk [vmem:[#allocation2 + $0x20] sm:$0xff] %vm98, 0.0
  %277 = vst.msk [vmem:[#allocation2 + $0x28] sm:$0xf] %vm273, 0.0
  %278 = vst.msk [vmem:[#allocation2 + $0x2] sm:$0xff] %vm98, %v267
  %279 = vst.msk [vmem:[#allocation2 + $0xa] sm:$0xff] %vm98, %v268
  %280 = vst.msk [vmem:[#allocation2 + $0x1a] sm:$0xff] %vm98, %v269
  %281 = vst.msk [vmem:[#allocation2 + $0x22] sm:$0xff] %vm98, %v270
  %v282 = vld [vmem:[#allocation2] sm:$0xff]
  %v283 = vld [vmem:[#allocation2 + $0x8] sm:$0xff]
  %v284 = vld [vmem:[#allocation2 + $0x10] sm:$0xf]
  %v285 = vld [vmem:[#allocation2 + $0x18] sm:$0xff]
  %v286 = vld [vmem:[#allocation2 + $0x20] sm:$0xff]
  %v287 = vld [vmem:[#allocation2 + $0x28] sm:$0xf]
  %v294 = vrot.slane %v282, 2
  %v295 = vrot.slane %v283, 2
  %v296 = vsel %vm47, %v294, %v295
  %v297 = vrot.slane %v284, 2
  %v298 = vsel %vm47, %v295, %v297
  %v299 = vrot.slane %v285, 2
  %v300 = vrot.slane %v286, 2
  %v301 = vsel %vm47, %v299, %v300
  %v302 = vrot.slane %v287, 2
  %v303 = vsel %vm47, %v300, %v302
  %304 = vrot.lane.b32.xlu0 %v296, 8
  %v305 = vpop.permute.xlu0 %304
  %306 = vrot.lane.b32.xlu0 %v298, 8
  %v307 = vpop.permute.xlu0 %306
  %308 = vrot.lane.b32.xlu0 %v301, 8
  %v309 = vpop.permute.xlu0 %308
  %310 = vrot.lane.b32.xlu0 %v303, 8
  %v311 = vpop.permute.xlu0 %310
  %v316 = vrot.slane %v282, 4
  %v317 = vrot.slane %v283, 4
  %v318 = vsel %vm70, %v316, %v317
  %v319 = vrot.slane %v284, 4
  %v320 = vsel %vm70, %v317, %v319
  %v321 = vrot.slane %v285, 4
  %v322 = vrot.slane %v286, 4
  %v323 = vsel %vm70, %v321, %v322
  %v324 = vrot.slane %v287, 4
  %v325 = vsel %vm70, %v322, %v324
  %326 = vrot.lane.b32.xlu0 %v318, 16
  %v327 = vpop.permute.xlu0 %326
  %328 = vrot.lane.b32.xlu0 %v320, 16
  %v329 = vpop.permute.xlu0 %328
  %330 = vrot.lane.b32.xlu0 %v323, 16
  %v331 = vpop.permute.xlu0 %330
  %332 = vrot.lane.b32.xlu0 %v325, 16
  %v333 = vpop.permute.xlu0 %332
  %v338 = vsel %vm98, %v282, %v305
  %v339 = vsel %vm98, %v283, %v307
  %v340 = vsel %vm98, %v285, %v309
  %v341 = vsel %vm98, %v286, %v311
  %vm342 = vcmask 130048
  %v343 = vsel %vm342, %v338, %v327
  %v344 = vsel %vm342, %v339, %v329
  %v345 = vsel %vm342, %v340, %v331
  %v346 = vsel %vm342, %v341, %v333
  %v347 = vld [vmem:[%s4] sm:$0xff]
  %v348 = vld [vmem:[%s4 + $0x8] sm:$0xff]
  %v349 = vld [vmem:[%s4 + $0x10] sm:$0xff]
  %vm350 = vcmask 195584
  %v352 = vsel %vm350, %v343, 0
  %v355 = vsel %vm350, %v344, 0
  %v358 = vsel %vm350, %v345, 0
  %v361 = vsel %vm350, %v346, 0
  %363 = vmatprep.subr.mxu0 0.0
  %364 = vmatpush1.msra.mxu0 0.0
  %365 = vmatprep.subr.mxu0 0.0
  %366 = vmatpush1.msra.mxu0 0.0
  %367 = vmatprep.subr.mxu0 0.0
  %368 = vmatpush1.msra.mxu0 0.0
  %369 = vmatprep.subr.mxu0 0.0
  %370 = vmatpush1.msra.mxu0 0.0
  %371 = vmatprep.subr.mxu0 0.0
  %372 = vmatpush1.msra.mxu0 0.0
  %373 = vmatprep.subr.mxu0 0.0
  %374 = vmatpush1.msra.mxu0 0.0
  %375 = vmatprep.subr.mxu0 0.0
  %376 = vmatpush1.msra.mxu0 0.0
  %377 = vmatprep.subr.mxu0 0.0
  %378 = vmatpush1.msra.mxu0 0.0
  %379 = vmatprep.subr.mxu0 0.0
  %380 = vmatpush1.msra.mxu0 0.0
  %381 = vmatprep.subr.mxu0 0.0
  %382 = vmatpush1.msra.mxu0 0.0
  %383 = vmatprep.subr.mxu0 0.0
  %384 = vmatpush1.msra.mxu0 0.0
  %385 = vmatprep.subr.mxu0 0.0
  %386 = vmatpush1.msra.mxu0 0.0
  %387 = vmatprep.subr.mxu0 0.0
  %388 = vmatpush1.msra.mxu0 0.0
  %389 = vmatprep.subr.mxu0 0.0
  %390 = vmatpush1.msra.mxu0 %v349
  %391 = vmatprep.subr.mxu0 0.0
  %392 = vmatpush1.msra.mxu0 %v348
  %393 = vmatprep.subr.mxu0 0.0
  %394 = vmatpush1.msra.mxu0 %v347
  %395 = vmatprep.subr.mxu0 0.0
  %396 = vmatpush2.msra.mxu0 0.0
  %397 = vmatprep.subr.mxu0 0.0
  %398 = vmatpush2.msra.mxu0 0.0
  %399 = vmatprep.subr.mxu0 0.0
  %400 = vmatpush2.msra.mxu0 0.0
  %401 = vmatprep.subr.mxu0 0.0
  %402 = vmatpush2.msra.mxu0 0.0
  %403 = vmatprep.subr.mxu0 0.0
  %404 = vmatpush2.msra.mxu0 0.0
  %405 = vmatprep.subr.mxu0 0.0
  %406 = vmatpush2.msra.mxu0 0.0
  %407 = vmatprep.subr.mxu0 0.0
  %408 = vmatpush2.msra.mxu0 0.0
  %409 = vmatprep.subr.mxu0 0.0
  %410 = vmatpush2.msra.mxu0 0.0
  %411 = vmatprep.subr.mxu0 0.0
  %412 = vmatpush2.msra.mxu0 0.0
  %413 = vmatprep.subr.mxu0 0.0
  %414 = vmatpush2.msra.mxu0 0.0
  %415 = vmatprep.subr.mxu0 0.0
  %416 = vmatpush2.msra.mxu0 0.0
  %417 = vmatprep.subr.mxu0 0.0
  %418 = vmatpush2.msra.mxu0 0.0
  %419 = vmatprep.subr.mxu0 0.0
  %420 = vmatpush2.msra.mxu0 0.0
  %421 = vmatprep.subr.mxu0 0.0
  %422 = vmatpush2.msra.mxu0 0.0
  %423 = vmatprep.subr.mxu0 0.0
  %424 = vmatpush2.msra.mxu0 0.0
  %425 = vmatprep.subr.mxu0 0.0
  %426 = vmatpush2.msra.mxu0 0.0
  %427 = vmatprep.mubr.f32.mxu0 0.0
  %428 = vmatmul.mubr.f32.gmra.mxu0 %v352
  %v429 = vpop.f32.mrf.mxu0
  %v430 = vadd.f32 0.0, %v429
  %v431 = vpop.f32.mrf.mxu0
  %432 = vmatprep.mubr.f32.mxu0 0.0
  %433 = vmatmul.mubr.f32.gmra.mxu0 %v355
  %v434 = vpop.f32.mrf.mxu0
  %v435 = vadd.f32 0.0, %v434
  %v436 = vpop.f32.mrf.mxu0
  %437 = vmatprep.mubr.f32.mxu0 0.0
  %438 = vmatmul.mubr.f32.gmra.mxu0 %v358
  %v439 = vpop.f32.mrf.mxu0
  %v440 = vadd.f32 0.0, %v439
  %v441 = vpop.f32.mrf.mxu0
  %442 = vmatprep.mubr.f32.mxu0 0.0
  %443 = vmatmul.mubr.f32.gmra.mxu0 %v361
  %v444 = vpop.f32.mrf.mxu0
  %v445 = vadd.f32 0.0, %v444
  %v446 = vpop.f32.mrf.mxu0
  %447 = vdwg.mxu0
  %v448 = vld [vmem:[%s5] sm:$0x1]
  %v449 = vld [vmem:[%s6] sm:$0x1]
  %v450 = vsel %vm98, %v430, 0.0
  %v451 = vsel %vm98, %v435, 0.0
  %v452 = vadd.f32 %v450, %v451
  %v453 = vsel %vm98, %v440, 0.0
  %v454 = vadd.f32 %v452, %v453
  %v455 = vsel %vm98, %v445, 0.0
  %v456 = vadd.f32 %v454, %v455
  %v457 = vrot.slane %v456, 4
  %v458 = vadd.f32 %v456, %v457
  %v459 = vrot.slane %v458, 2
  %v460 = vadd.f32 %v458, %v459
  %v461 = vrot.slane %v460, 1
  %v462 = vadd.f32 %v460, %v461
  %v463 = vmul.f32 %v462, 0.03125
  %v464 = vmul.f32 %v430, %v430
  %v465 = vmul.f32 %v435, %v435
  %v466 = vmul.f32 %v440, %v440
  %v467 = vmul.f32 %v445, %v445
  %v468 = vsel %vm98, %v464, 0.0
  %v469 = vsel %vm98, %v465, 0.0
  %v470 = vadd.f32 %v468, %v469
  %v471 = vsel %vm98, %v466, 0.0
  %v472 = vadd.f32 %v470, %v471
  %v473 = vsel %vm98, %v467, 0.0
  %v474 = vadd.f32 %v472, %v473
  %v475 = vrot.slane %v474, 4
  %v476 = vadd.f32 %v474, %v475
  %v477 = vrot.slane %v476, 2
  %v478 = vadd.f32 %v476, %v477
  %v479 = vrot.slane %v478, 1
  %v480 = vadd.f32 %v478, %v479
  %v481 = vmul.f32 %v480, 0.03125
  %v482 = vmul.f32 %v463, %v463
  %v483 = vsub.f32 %v481, %v482
  %v484 = vadd.f32 %v483, 1e-05
  %v485 = vrsqrt.pop %v484
  %v486 = vmul.f32 %v448, %v485
  %v487 = vmul.f32 %v463, %v486
  %v488 = vsub.f32 %v449, %v487
  %v490 = vlaneseq
  %v491 = vshrl.u32 %v490, 7
  %v492 = vsub.s32 0, %v491
  %v493 = vrot.slane %v486, %v492
  %v495 = vmul.f32 %v430, %v493
  %v496 = vmul.f32 %v435, %v493
  %v497 = vmul.f32 %v440, %v493
  %v498 = vmul.f32 %v445, %v493
  %v500 = vlaneseq
  %v501 = vshrl.u32 %v500, 7
  %v502 = vsub.s32 0, %v501
  %v503 = vrot.slane %v488, %v502
  %v505 = vadd.f32 %v495, %v503
  %v506 = vadd.f32 %v496, %v503
  %v507 = vadd.f32 %v497, %v503
  %v508 = vadd.f32 %v498, %v503
  %v509 = vld [vmem:[%s7] sm:$0xf]
  %v510 = vsel %vm93, %v50, 0
  %v512 = vsel %vm93, %v52, 0
  %v514 = vsel %vm93, %v55, 0
  %v516 = vsel %vm93, %v57, 0
  %v519 = vsel %vm70, %v509, 0
  %521 = vmatprep.subr.mxu0 0.0
  %522 = vmatpush1.msra.mxu0 0.0
  %523 = vmatprep.subr.mxu0 0.0
  %524 = vmatpush1.msra.mxu0 0.0
  %525 = vmatprep.subr.mxu0 0.0
  %526 = vmatpush1.msra.mxu0 0.0
  %527 = vmatprep.subr.mxu0 0.0
  %528 = vmatpush1.msra.mxu0 0.0
  %529 = vmatprep.subr.mxu0 0.0
  %530 = vmatpush1.msra.mxu0 0.0
  %531 = vmatprep.subr.mxu0 0.0
  %532 = vmatpush1.msra.mxu0 0.0
  %533 = vmatprep.subr.mxu0 0.0
  %534 = vmatpush1.msra.mxu0 0.0
  %535 = vmatprep.subr.mxu0 0.0
  %536 = vmatpush1.msra.mxu0 0.0
  %537 = vmatprep.subr.mxu0 0.0
  %538 = vmatpush1.msra.mxu0 0.0
  %539 = vmatprep.subr.mxu0 0.0
  %540 = vmatpush1.msra.mxu0 0.0
  %541 = vmatprep.subr.mxu0 0.0
  %542 = vmatpush1.msra.mxu0 0.0
  %543 = vmatprep.subr.mxu0 0.0
  %544 = vmatpush1.msra.mxu0 0.0
  %545 = vmatprep.subr.mxu0 0.0
  %546 = vmatpush1.msra.mxu0 0.0
  %547 = vmatprep.subr.mxu0 0.0
  %548 = vmatpush1.msra.mxu0 0.0
  %549 = vmatprep.subr.mxu0 0.0
  %550 = vmatpush1.msra.mxu0 0.0
  %551 = vmatprep.subr.mxu0 0.0
  %552 = vmatpush1.msra.mxu0 %v519
  %553 = vmatprep.subr.mxu0 0.0
  %554 = vmatpush2.msra.mxu0 0.0
  %555 = vmatprep.subr.mxu0 0.0
  %556 = vmatpush2.msra.mxu0 0.0
  %557 = vmatprep.subr.mxu0 0.0
  %558 = vmatpush2.msra.mxu0 0.0
  %559 = vmatprep.subr.mxu0 0.0
  %560 = vmatpush2.msra.mxu0 0.0
  %561 = vmatprep.subr.mxu0 0.0
  %562 = vmatpush2.msra.mxu0 0.0
  %563 = vmatprep.subr.mxu0 0.0
  %564 = vmatpush2.msra.mxu0 0.0
  %565 = vmatprep.subr.mxu0 0.0
  %566 = vmatpush2.msra.mxu0 0.0
  %567 = vmatprep.subr.mxu0 0.0
  %568 = vmatpush2.msra.mxu0 0.0
  %569 = vmatprep.subr.mxu0 0.0
  %570 = vmatpush2.msra.mxu0 0.0
  %571 = vmatprep.subr.mxu0 0.0
  %572 = vmatpush2.msra.mxu0 0.0
  %573 = vmatprep.subr.mxu0 0.0
  %574 = vmatpush2.msra.mxu0 0.0
  %575 = vmatprep.subr.mxu0 0.0
  %576 = vmatpush2.msra.mxu0 0.0
  %577 = vmatprep.subr.mxu0 0.0
  %578 = vmatpush2.msra.mxu0 0.0
  %579 = vmatprep.subr.mxu0 0.0
  %580 = vmatpush2.msra.mxu0 0.0
  %581 = vmatprep.subr.mxu0 0.0
  %582 = vmatpush2.msra.mxu0 0.0
  %583 = vmatprep.subr.mxu0 0.0
  %584 = vmatpush2.msra.mxu0 0.0
  %585 = vmatprep.mubr.f32.mxu0 0.0
  %586 = vmatmul.mubr.f32.gmra.mxu0 %v510
  %v587 = vpop.f32.mrf.mxu0
  %v588 = vadd.f32 0.0, %v587
  %v589 = vpop.f32.mrf.mxu0
  %590 = vmatprep.mubr.f32.mxu0 0.0
  %591 = vmatmul.mubr.f32.gmra.mxu0 %v512
  %v592 = vpop.f32.mrf.mxu0
  %v593 = vadd.f32 0.0, %v592
  %v594 = vpop.f32.mrf.mxu0
  %595 = vmatprep.mubr.f32.mxu0 0.0
  %596 = vmatmul.mubr.f32.gmra.mxu0 %v514
  %v597 = vpop.f32.mrf.mxu0
  %v598 = vadd.f32 0.0, %v597
  %v599 = vpop.f32.mrf.mxu0
  %600 = vmatprep.mubr.f32.mxu0 0.0
  %601 = vmatmul.mubr.f32.gmra.mxu0 %v516
  %v602 = vpop.f32.mrf.mxu0
  %v603 = vadd.f32 0.0, %v602
  %v604 = vpop.f32.mrf.mxu0
  %605 = vdwg.mxu0
  %v606 = vld [vmem:[%s8] sm:$0x1]
  %v607 = vld [vmem:[%s9] sm:$0x1]
  %v608 = vsel %vm98, %v588, 0.0
  %v609 = vsel %vm98, %v593, 0.0
  %v610 = vadd.f32 %v608, %v609
  %v611 = vsel %vm98, %v598, 0.0
  %v612 = vadd.f32 %v610, %v611
  %v613 = vsel %vm98, %v603, 0.0
  %v614 = vadd.f32 %v612, %v613
  %v615 = vrot.slane %v614, 4
  %v616 = vadd.f32 %v614, %v615
  %v617 = vrot.slane %v616, 2
  %v618 = vadd.f32 %v616, %v617
  %v619 = vrot.slane %v618, 1
  %v620 = vadd.f32 %v618, %v619
  %v621 = vmul.f32 %v620, 0.03125
  %v622 = vmul.f32 %v588, %v588
  %v623 = vmul.f32 %v593, %v593
  %v624 = vmul.f32 %v598, %v598
  %v625 = vmul.f32 %v603, %v603
  %v626 = vsel %vm98, %v622, 0.0
  %v627 = vsel %vm98, %v623, 0.0
  %v628 = vadd.f32 %v626, %v627
  %v629 = vsel %vm98, %v624, 0.0
  %v630 = vadd.f32 %v628, %v629
  %v631 = vsel %vm98, %v625, 0.0
  %v632 = vadd.f32 %v630, %v631
  %v633 = vrot.slane %v632, 4
  %v634 = vadd.f32 %v632, %v633
  %v635 = vrot.slane %v634, 2
  %v636 = vadd.f32 %v634, %v635
  %v637 = vrot.slane %v636, 1
  %v638 = vadd.f32 %v636, %v637
  %v639 = vmul.f32 %v638, 0.03125
  %v640 = vmul.f32 %v621, %v621
  %v641 = vsub.f32 %v639, %v640
  %v642 = vadd.f32 %v641, 1e-05
  %v643 = vrsqrt.pop %v642
  %v644 = vmul.f32 %v606, %v643
  %v645 = vmul.f32 %v621, %v644
  %v646 = vsub.f32 %v607, %v645
  %v648 = vlaneseq
  %v649 = vshrl.u32 %v648, 7
  %v650 = vsub.s32 0, %v649
  %v651 = vrot.slane %v644, %v650
  %v653 = vmul.f32 %v588, %v651
  %v654 = vmul.f32 %v593, %v651
  %v655 = vmul.f32 %v598, %v651
  %v656 = vmul.f32 %v603, %v651
  %v658 = vlaneseq
  %v659 = vshrl.u32 %v658, 7
  %v660 = vsub.s32 0, %v659
  %v661 = vrot.slane %v646, %v660
  %v663 = vadd.f32 %v653, %v661
  %v664 = vadd.f32 %v654, %v661
  %v665 = vadd.f32 %v655, %v661
  %v666 = vadd.f32 %v656, %v661
  %v667 = vadd.f32 %v505, %v663
  %v668 = vadd.f32 %v506, %v664
  %v669 = vadd.f32 %v507, %v665
  %v670 = vadd.f32 %v508, %v666
  %v671 = vmax.f32 %v667, 0.0
  %v672 = vmax.f32 %v668, 0.0
  %v673 = vmax.f32 %v669, 0.0
  %v674 = vmax.f32 %v670, 0.0
  %675 = vst.msk [vmem:[%s10] sm:$0xff] %vm98, %v671
  %676 = vst.msk [vmem:[%s10 + $0x8] sm:$0xff] %vm98, %v672
  %677 = vst.msk [vmem:[%s10 + $0x10] sm:$0xff] %vm98, %v673
  %678 = vst.msk [vmem:[%s10 + $0x18] sm:$0xff] %vm98, %v674
  // Predicated region
  $region42: #{tpu_custom_call.1} parent=0 // pred_check
    _
  $region43: #{tpu_custom_call.1} parent=0 // pred_check_branch
    %680 = sbr.rel (0) target = $region45
  $region44: #{tpu_custom_call.1} parent=0 // pred_region
    _
  $region45: #{tpu_custom_call.1} parent=0 // pred_fallthru
    _
  // Predicated region
  $region46: #{tpu_custom_call.1} parent=0 // pred_check
    _
  $region47: #{tpu_custom_call.1} parent=0 // pred_check_branch
    %682 = sbr.rel (0) target = $region49
  $region48: #{tpu_custom_call.1} parent=0 // pred_region
    _
  $region49: #{tpu_custom_call.1} parent=0 // pred_fallthru
    _

</llo_original>
